<compile_context>
chip_gen: v6e
topology: v6e:2x2x1
jax: 0.10.0
libtpu: 0.0.40
codegen_flags: <defaults>
</compile_context>

<pallas_src>
from functools import partial

import jax
import jax.numpy as jnp
from jax.experimental import pallas as pl
from jax.experimental.pallas import tpu as pltpu

LANES = 128
HIDDEN = 128


def _round_up(x, m):
    return ((x + m - 1) // m) * m


def ppo_kernel(x_ref, w1_ref, b1_ref, wh_ref, bh_ref, probs_ref, value_ref, *, n_actions):
    # shared = ReLU(x @ W1 + b1); accumulate in f32 regardless of operand dtype
    x = x_ref[...]                                                       # [TB, D]
    h = jnp.dot(x, w1_ref[...], preferred_element_type=jnp.float32) + b1_ref[...]
    h = jnp.maximum(h, 0.0)                                              # [TB, 128] f32

    # fused heads: one [128, 128] MXU pass; cols 0..A-1 = actor logits, col A = critic value
    heads = jnp.dot(h.astype(wh_ref.dtype), wh_ref[...],
                    preferred_element_type=jnp.float32) + bh_ref[...]    # [TB, 128] f32

    col = jax.lax.broadcasted_iota(jnp.int32, heads.shape, 1)
    actor_mask = col < n_actions

    # masked softmax over the first A lanes only (all math in f32)
    logits = jnp.where(actor_mask, heads, -jnp.inf)
    m = jnp.max(logits, axis=-1, keepdims=True)
    e = jnp.where(actor_mask, jnp.exp(logits - m), 0.0)
    denom = jnp.sum(e, axis=-1, keepdims=True)
    probs = e * pl.reciprocal(denom, approx=False)                       # exact divide path

    # narrow, full-extent output blocks: ~25x less HBM writeback than a padded 128-lane slab
    probs_ref[...] = probs[:, :n_actions]                                # [TB, A]
    value_ref[...] = heads[:, n_actions:n_actions + 1]                   # [TB, 1]


def prepare_params(w1, b1, wa, ba, wc, bc, *, compute_dtype=jnp.bfloat16):
    """One-time weight prep (fusion / padding / casts), hoisted out of the forward path."""
    H = w1.shape[1]
    A = wa.shape[1]
    assert H == HIDDEN

    # fuse actor + critic heads and pad the fused head to a lane multiple (N=128 MXU pass)
    wh = jnp.concatenate([wa, wc], axis=1)                               # [H, A+1]
    bh = jnp.concatenate([ba, bc], axis=0)                               # [A+1]
    head_pad = _round_up(A + 1, LANES)
    wh = jnp.pad(wh, ((0, 0), (0, head_pad - (A + 1))))
    bh = jnp.pad(bh, (0, head_pad - (A + 1))).reshape(1, head_pad)

    return {
        "w1": jnp.asarray(w1, compute_dtype),                            # [D, H]
        "b1": jnp.asarray(b1, jnp.float32).reshape(1, H),                # f32 bias
        "wh": jnp.asarray(wh, compute_dtype),                            # [H, 128]
        "bh": jnp.asarray(bh, jnp.float32),                              # [1, 128] f32
        "n_actions": A,
        "compute_dtype": jnp.dtype(compute_dtype),
    }


def ppo_forward(state, params, *, max_tile=1024):
    """Returns (action_probs [B, A], value [B, 1]) matching the PyTorch module."""
    w1, b1, wh, bh = params["w1"], params["b1"], params["wh"], params["bh"]
    A = params["n_actions"]
    compute_dtype = params["compute_dtype"]
    D, H = w1.shape
    HP = wh.shape[1]

    state = jnp.asarray(state)
    if state.dtype != compute_dtype:           # callers handing in bf16 skip this cast entirely
        state = state.astype(compute_dtype)
    B = state.shape[0]
    assert state.shape[1] == D

    # sublane packing: 8 rows for f32 tiles, 16 for bf16 (32 for 8-bit dtypes)
    sub = {4: 8, 2: 16, 1: 32}.get(jnp.dtype(compute_dtype).itemsize, 8)

    # tile choice: big tiles amortize ~0.35us/step overhead, but when the batch is big enough
    # cap TB so the grid has >=2 steps and the "parallel" axis can shard across v7x's 2 TCs.
    tb_cap = max_tile
    if B > sub:
        tb_cap = min(max_tile, _round_up(pl.cdiv(B, 2), sub))
    TB = max(sub, min(tb_cap, _round_up(B, sub)))
    B_pad = _round_up(B, TB)
    if B_pad != B:
        state = jnp.pad(state, ((0, B_pad - B), (0, 0)))

    grid = (B_pad // TB,)
    probs, value = pl.pallas_call(
        partial(ppo_kernel, n_actions=A),
        out_shape=(jax.ShapeDtypeStruct((B_pad, A), jnp.float32),
                   jax.ShapeDtypeStruct((B_pad, 1), jnp.float32)),
        grid=grid,
        in_specs=[
            pl.BlockSpec((TB, D), lambda i: (i, 0)),       # state tile; D = full extent (no pad)
            pl.BlockSpec((D, H), lambda i: (0, 0)),        # W1 resident
            pl.BlockSpec((1, H), lambda i: (0, 0)),        # b1 resident
            pl.BlockSpec((H, HP), lambda i: (0, 0)),       # fused head weight resident
            pl.BlockSpec((1, HP), lambda i: (0, 0)),       # fused head bias resident
        ],
        out_specs=[
            pl.BlockSpec((TB, A), lambda i: (i, 0)),       # action probs (full-extent lanes)
            pl.BlockSpec((TB, 1), lambda i: (i, 0)),       # critic value
        ],
        compiler_params=pltpu.CompilerParams(
            dimension_semantics=("parallel",)),            # shard batch across TCs (v7x)
    )(state, w1, b1, wh, bh)

    if B_pad != B:
        probs = probs[:B]
        value = value[:B]
    return probs, value


def init_params(key, input_dim, n_actions, hidden=HIDDEN):
    # PyTorch-style init: U(-1/sqrt(fan_in), 1/sqrt(fan_in)); weights stored [in, out].
    ks = jax.random.split(key, 6)

    def uniform(k, shape, fan_in):
        bound = 1.0 / jnp.sqrt(jnp.float32(fan_in))
        return jax.random.uniform(k, shape, jnp.float32, -bound, bound)

    w1 = uniform(ks[0], (input_dim, hidden), input_dim)
    b1 = uniform(ks[1], (hidden,), input_dim)
    wa = uniform(ks[2], (hidden, n_actions), hidden)
    ba = uniform(ks[3], (n_actions,), hidden)
    wc = uniform(ks[4], (hidden, 1), hidden)
    bc = uniform(ks[5], (1,), hidden)
    return w1, b1, wa, ba, wc, bc


def reference_forward(state, w1, b1, wa, ba, wc, bc):
    h = jnp.maximum(state @ w1 + b1, 0.0)
    probs = jax.nn.softmax(h @ wa + ba, axis=-1)
    value = h @ wc + bc
    return probs, value


if __name__ == "__main__":
    key = jax.random.PRNGKey(0)
    k_params, k_state1, k_state2 = jax.random.split(key, 3)

    input_dim = 32
    n_actions = 4
    raw_params = init_params(k_params, input_dim, n_actions)

    # weight prep hoisted out of the forward path: done once per dtype, reused across calls
    params_f32 = prepare_params(*raw_params, compute_dtype=jnp.float32)
    params_bf16 = prepare_params(*raw_params, compute_dtype=jnp.bfloat16)  # default / fast path

    # ---- test 1: small batch, f32 MXU path, tight tolerance ----
    batch = 8
    state = jax.random.normal(k_state1, (batch, input_dim), jnp.float32)
    probs, value = jax.block_until_ready(ppo_forward(state, params_f32))
    ref_probs, ref_value = reference_forward(state, *raw_params)
    assert probs.shape == (batch, n_actions) and value.shape == (batch, 1)
    assert jnp.allclose(probs, ref_probs, atol=1e-5, rtol=1e-5)
    assert jnp.allclose(value, ref_value, atol=1e-5, rtol=1e-5)
    assert jnp.allclose(jnp.sum(probs, axis=-1), 1.0, atol=1e-5)

    # ---- test 2: non-multiple batch + multi-step grid (forces padding & pipelining) ----
    batch2 = 20
    state2 = jax.random.normal(k_state2, (batch2, input_dim), jnp.float32)
    probs2, value2 = jax.block_until_ready(
        ppo_forward(state2, params_f32, max_tile=8))
    ref_probs2, ref_value2 = reference_forward(state2, *raw_params)
    assert probs2.shape == (batch2, n_actions) and value2.shape == (batch2, 1)
    assert jnp.allclose(probs2, ref_probs2, atol=1e-5, rtol=1e-5)
    assert jnp.allclose(value2, ref_value2, atol=1e-5, rtol=1e-5)

    # ---- test 3: default bf16 MXU operands (all gens have bf16 MXUs), f32 accumulate ----
    probs3, value3 = jax.block_until_ready(ppo_forward(state, params_bf16))
    assert probs3.shape == (batch, n_actions) and value3.shape == (batch, 1)
    assert jnp.allclose(jnp.sum(probs3, axis=-1), 1.0, atol=1e-4)
    assert jnp.allclose(probs3, ref_probs, atol=5e-2, rtol=5e-2)
    assert jnp.allclose(value3, ref_value, atol=5e-2, rtol=5e-2)

    print("KERNEL_OK")
</pallas_src>

<mosaic_0001>
module attributes {stable_mosaic.version = 11 : i64} {
  func.func @ppo_kernel(%arg0: i32, %arg1: memref<8x32xf32, #tpu.memory_space<vmem>>, %arg2: memref<32x128xf32, #tpu.memory_space<vmem>>, %arg3: memref<1x128xf32, #tpu.memory_space<vmem>>, %arg4: memref<128x128xf32, #tpu.memory_space<vmem>>, %arg5: memref<1x128xf32, #tpu.memory_space<vmem>>, %arg6: memref<8x4xf32, #tpu.memory_space<vmem>>, %arg7: memref<8x1xf32, #tpu.memory_space<vmem>>) attributes {dimension_semantics = [#tpu.dimension_semantics<parallel>], iteration_bounds = array<i64: 1>, scalar_prefetch = 0 : i64, scratch_operands = 0 : i64, tpu.core_type = #tpu.core_type<tc>, window_params = [{transform_indices = @transform_0, window_bounds = array<i64: 8, 32>}, {pipeline_mode = #tpu.pipeline_mode<synchronous>, transform_indices = @transform_1, window_bounds = array<i64: 32, 128>}, {pipeline_mode = #tpu.pipeline_mode<synchronous>, transform_indices = @transform_2, window_bounds = array<i64: 1, 128>}, {pipeline_mode = #tpu.pipeline_mode<synchronous>, transform_indices = @transform_3, window_bounds = array<i64: 128, 128>}, {pipeline_mode = #tpu.pipeline_mode<synchronous>, transform_indices = @transform_4, window_bounds = array<i64: 1, 128>}, {transform_indices = @transform_5, window_bounds = array<i64: 8, 4>}, {transform_indices = @transform_6, window_bounds = array<i64: 8, 1>}]} {
    %c0 = arith.constant 0 : index
    %c0_0 = arith.constant 0 : index
    %0 = vector.load %arg1[%c0, %c0_0] : memref<8x32xf32, #tpu.memory_space<vmem>>, vector<8x32xf32>
    %c0_1 = arith.constant 0 : index
    %c0_2 = arith.constant 0 : index
    %1 = vector.load %arg2[%c0_1, %c0_2] : memref<32x128xf32, #tpu.memory_space<vmem>>, vector<32x128xf32>
    %cst = arith.constant dense<0.000000e+00> : vector<8x128xf32>
    %2 = tpu.matmul %0, %1, %cst {dimension_numbers = #tpu.dot_dimension_numbers<[1], [0], [0], [1], [0, 0, 1, 1], [], []>} : vector<8x32xf32>, vector<32x128xf32>, vector<8x128xf32> -> vector<8x128xf32>
    %c0_3 = arith.constant 0 : index
    %c0_4 = arith.constant 0 : index
    %3 = vector.load %arg3[%c0_3, %c0_4] : memref<1x128xf32, #tpu.memory_space<vmem>>, vector<1x128xf32>
    %4 = vector.broadcast %3 : vector<1x128xf32> to vector<8x128xf32>
    %5 = arith.addf %2, %4 : vector<8x128xf32>
    %cst_5 = arith.constant 0.000000e+00 : f32
    %6 = vector.broadcast %cst_5 : f32 to vector<8x128xf32>
    %7 = arith.maximumf %5, %6 : vector<8x128xf32>
    %c0_6 = arith.constant 0 : index
    %c0_7 = arith.constant 0 : index
    %8 = vector.load %arg4[%c0_6, %c0_7] : memref<128x128xf32, #tpu.memory_space<vmem>>, vector<128x128xf32>
    %cst_8 = arith.constant dense<0.000000e+00> : vector<8x128xf32>
    %9 = tpu.matmul %7, %8, %cst_8 {dimension_numbers = #tpu.dot_dimension_numbers<[1], [0], [0], [1], [0, 0, 1, 1], [], []>} : vector<8x128xf32>, vector<128x128xf32>, vector<8x128xf32> -> vector<8x128xf32>
    %c0_9 = arith.constant 0 : index
    %c0_10 = arith.constant 0 : index
    %10 = vector.load %arg5[%c0_9, %c0_10] : memref<1x128xf32, #tpu.memory_space<vmem>>, vector<1x128xf32>
    %11 = vector.broadcast %10 : vector<1x128xf32> to vector<8x128xf32>
    %12 = arith.addf %9, %11 : vector<8x128xf32>
    %13 = tpu.iota {dimensions = array<i32: 1>} : vector<8x128xi32>
    %c4_i32 = arith.constant 4 : i32
    %14 = vector.broadcast %c4_i32 : i32 to vector<8x128xi32>
    %15 = arith.cmpi slt, %13, %14 : vector<8x128xi32>
    %cst_11 = arith.constant 0xFF800000 : f32
    %16 = vector.broadcast %cst_11 : f32 to vector<8x128xf32>
    %17 = arith.select %15, %12, %16 : vector<8x128xi1>, vector<8x128xf32>
    %cst_12 = arith.constant dense<0xFF800000> : vector<8xf32>
    %18 = vector.multi_reduction <maximumf>, %17, %cst_12 [1] : vector<8x128xf32> to vector<8xf32>
    %19 = vector.shape_cast %18 : vector<8xf32> to vector<8x1xf32>
    %20 = vector.broadcast %19 : vector<8x1xf32> to vector<8x128xf32>
    %21 = arith.subf %17, %20 : vector<8x128xf32>
    %22 = math.exp %21 : vector<8x128xf32>
    %cst_13 = arith.constant 0.000000e+00 : f32
    %23 = vector.broadcast %cst_13 : f32 to vector<8x128xf32>
    %24 = arith.select %15, %22, %23 : vector<8x128xi1>, vector<8x128xf32>
    %cst_14 = arith.constant dense<0.000000e+00> : vector<8xf32>
    %25 = vector.multi_reduction <add>, %24, %cst_14 [1] : vector<8x128xf32> to vector<8xf32>
    %26 = vector.shape_cast %25 : vector<8xf32> to vector<8x1xf32>
    %27 = tpu.reciprocal %26 : vector<8x1xf32> -> vector<8x1xf32>
    %28 = vector.broadcast %27 : vector<8x1xf32> to vector<8x128xf32>
    %29 = arith.mulf %24, %28 : vector<8x128xf32>
    %30 = vector.extract_strided_slice %29 {offsets = [0, 0], sizes = [8, 4], strides = [1, 1]} : vector<8x128xf32> to vector<8x4xf32>
    %c0_15 = arith.constant 0 : index
    %c0_16 = arith.constant 0 : index
    %31 = vector.load %arg6[%c0_15, %c0_16] : memref<8x4xf32, #tpu.memory_space<vmem>>, vector<8x4xf32>
    tpu.vector_store %arg6[%c0_15, %c0_16], %30 {strides = array<i32>} : memref<8x4xf32, #tpu.memory_space<vmem>>, vector<8x4xf32>,
    %32 = vector.extract_strided_slice %12 {offsets = [0, 4], sizes = [8, 1], strides = [1, 1]} : vector<8x128xf32> to vector<8x1xf32>
    %c0_17 = arith.constant 0 : index
    %c0_18 = arith.constant 0 : index
    %33 = vector.load %arg7[%c0_17, %c0_18] : memref<8x1xf32, #tpu.memory_space<vmem>>, vector<8x1xf32>
    tpu.vector_store %arg7[%c0_17, %c0_18], %32 {strides = array<i32>} : memref<8x1xf32, #tpu.memory_space<vmem>>, vector<8x1xf32>,
    return
  }
  func.func @transform_0(%arg0: i32) -> (i32, i32) {
    %c0_i32 = arith.constant 0 : i32
    %c0_i32_0 = arith.constant 0 : i32
    return %arg0, %c0_i32 : i32, i32
  }
  func.func @transform_1(%arg0: i32) -> (i32, i32) {
    %c0_i32 = arith.constant 0 : i32
    %c0_i32_0 = arith.constant 0 : i32
    %c0_i32_1 = arith.constant 0 : i32
    return %c0_i32, %c0_i32_0 : i32, i32
  }
  func.func @transform_2(%arg0: i32) -> (i32, i32) {
    %c0_i32 = arith.constant 0 : i32
    %c0_i32_0 = arith.constant 0 : i32
    %c0_i32_1 = arith.constant 0 : i32
    return %c0_i32, %c0_i32_0 : i32, i32
  }
  func.func @transform_3(%arg0: i32) -> (i32, i32) {
    %c0_i32 = arith.constant 0 : i32
    %c0_i32_0 = arith.constant 0 : i32
    %c0_i32_1 = arith.constant 0 : i32
    return %c0_i32, %c0_i32_0 : i32, i32
  }
  func.func @transform_4(%arg0: i32) -> (i32, i32) {
    %c0_i32 = arith.constant 0 : i32
    %c0_i32_0 = arith.constant 0 : i32
    %c0_i32_1 = arith.constant 0 : i32
    return %c0_i32, %c0_i32_0 : i32, i32
  }
  func.func @transform_5(%arg0: i32) -> (i32, i32) {
    %c0_i32 = arith.constant 0 : i32
    %c0_i32_0 = arith.constant 0 : i32
    return %arg0, %c0_i32 : i32, i32
  }
  func.func @transform_6(%arg0: i32) -> (i32, i32) {
    %c0_i32 = arith.constant 0 : i32
    %c0_i32_0 = arith.constant 0 : i32
    return %arg0, %c0_i32 : i32, i32
  }
}

</mosaic_0001>

<llo_original>
// kernel: tpu_custom_call.1
$region0: #{tpu_custom_call.1}
  #allocation0 [shape = 'u32[]', space=smem, size = 0x4, offset = 0x4, fixed_abs, tag = 'smem constant byte address 0x4 - core index']
  #allocation1 [shape = 'u32[144,128]{1,0:T(1,128)}', space=vmem, size = 0x12000, scoped, tag = 'internal scratch']
  %s0 = inlined_call_operand.hbm [shape: f32[8,32], index: 0, kind: input, shape index: {}]
  %s1 = inlined_call_operand.hbm [shape: f32[32,128], index: 1, kind: input, shape index: {}]
  %s2 = inlined_call_operand.vmem [shape: f32[1,128], index: 2, kind: input, shape index: {}]
  %s3 = inlined_call_operand.hbm [shape: f32[128,128], index: 3, kind: input, shape index: {}]
  %s4 = inlined_call_operand.vmem [shape: f32[1,128], index: 4, kind: input, shape index: {}]
  %s5 = inlined_call_operand.vmem [shape: f32[8,4], index: 5, kind: output, shape index: {0}]
  %s6 = inlined_call_operand.vmem [shape: f32[8,1], index: 6, kind: output, shape index: {1}]
  %7 = xla_tuple %s5, %s6
  %s8 = sld [smem:[#allocation0]]
  $region50: #{tpu_custom_call.1} parent=0
    _
  %s10 = ssub.s32 1, %s8
  %s11 = scalar_select 0, %s10, %s8
  $region1: #{tpu_custom_call.1} parent=0
    #allocation2 [shape = 'u8[4096]{0}', space=vmem, size = 0x1000, scoped, tag = 'input window, operand 0, single buffered']
    #allocation3 [shape = 's32[1]{0}', space=sflag, size = 0x4, scoped, tag = 'scoped memory for tpu_custom_call.1']
    #allocation4 [shape = 'u8[16384]{0}', space=vmem, size = 0x4000, scoped, tag = 'input window, operand 1, single buffered']
    #allocation5 [shape = 's32[1]{0}', space=sflag, size = 0x4, scoped, tag = 'scoped memory for tpu_custom_call.1']
    #allocation6 [shape = 'u8[65536]{0}', space=vmem, size = 0x10000, scoped, tag = 'input window, operand 3, single buffered']
    %12 = vsyncpa [#allocation3], 0
    %13 = vsyncpa [#allocation5], 0
    // Predicated region
    $region2: #{tpu_custom_call.1} parent=1 // pred_check
      _
    $region3: #{tpu_custom_call.1} parent=1 // pred_check_branch
      %15 = sbr.rel (0) target = $region5
    $region4: #{tpu_custom_call.1} parent=1 // pred_region
      %s17 = ssub.s32 128, 128
      %18 = vsyncadd [#allocation3], %s17
      %s20 = sshll.u32 [#allocation2], 4
      %s21 = int_to_ptr.vmem [resolvable:$true] %s20
      %23 = dma.hbm_to_vmem [thread:$0]  %s0, 128, %s21, [#allocation3]
    $region5: #{tpu_custom_call.1} parent=1 // pred_fallthru
      _
    // Predicated region
    $region6: #{tpu_custom_call.1} parent=1 // pred_check
      _
    $region7: #{tpu_custom_call.1} parent=1 // pred_check_branch
      %25 = sbr.rel (0) target = $region9
    $region8: #{tpu_custom_call.1} parent=1 // pred_region
      %s27 = ssub.s32 512, 512
      %28 = vsyncadd [#allocation5], %s27
      %s29 = sshll.u32 [#allocation4], 4
      %s30 = int_to_ptr.vmem [resolvable:$true] %s29
      %35 = dma.hbm_to_vmem [thread:$0]  %s1, 512, %s30, [#allocation5], 128, 128, 8
    $region9: #{tpu_custom_call.1} parent=1 // pred_fallthru
      _
    // Predicated region
    $region10: #{tpu_custom_call.1} parent=1 // pred_check
      _
    $region11: #{tpu_custom_call.1} parent=1 // pred_check_branch
      %37 = sbr.rel (0) target = $region13
    $region12: #{tpu_custom_call.1} parent=1 // pred_region
      _
    $region13: #{tpu_custom_call.1} parent=1 // pred_fallthru
      _
    // Predicated region
    $region14: #{tpu_custom_call.1} parent=1 // pred_check
      _
    $region15: #{tpu_custom_call.1} parent=1 // pred_check_branch
      %39 = sbr.rel (0) target = $region17
    $region16: #{tpu_custom_call.1} parent=1 // pred_region
      %s41 = ssub.s32 2048, 2048
      %42 = vsyncadd [#allocation5], %s41
      %s43 = sshll.u32 [#allocation6], 4
      %s44 = int_to_ptr.vmem [resolvable:$true] %s43
      %49 = dma.hbm_to_vmem [thread:$0]  %s3, 2048, %s44, [#allocation5], 128, 128, 8
    $region17: #{tpu_custom_call.1} parent=1 // pred_fallthru
      _
    // Predicated region
    $region18: #{tpu_custom_call.1} parent=1 // pred_check
      _
    $region19: #{tpu_custom_call.1} parent=1 // pred_check_branch
      %51 = sbr.rel (0) target = $region21
    $region20: #{tpu_custom_call.1} parent=1 // pred_region
      _
    $region21: #{tpu_custom_call.1} parent=1 // pred_fallthru
      _
    // Predicated region
    $region22: #{tpu_custom_call.1} parent=1 // pred_check
      _
    $region23: #{tpu_custom_call.1} parent=1 // pred_check_branch
      %53 = sbr.rel (0) target = $region25
    $region24: #{tpu_custom_call.1} parent=1 // pred_region
      %54 = dma.done [#allocation3], 128
    $region25: #{tpu_custom_call.1} parent=1 // pred_fallthru
      _
    // Predicated region
    $region26: #{tpu_custom_call.1} parent=1 // pred_check
      _
    $region27: #{tpu_custom_call.1} parent=1 // pred_check_branch
      %56 = sbr.rel (0) target = $region29
    $region28: #{tpu_custom_call.1} parent=1 // pred_region
      %57 = dma.done [#allocation5], 512
    $region29: #{tpu_custom_call.1} parent=1 // pred_fallthru
      _
    // Predicated region
    $region30: #{tpu_custom_call.1} parent=1 // pred_check
      _
    $region31: #{tpu_custom_call.1} parent=1 // pred_check_branch
      %59 = sbr.rel (0) target = $region33
    $region32: #{tpu_custom_call.1} parent=1 // pred_region
      %60 = dma.done [#allocation5], 2048
    $region33: #{tpu_custom_call.1} parent=1 // pred_fallthru
      _
    %v61 = vld [vmem:[#allocation2] sm:$0xff]
    %v62 = vld [vmem:[#allocation4] sm:$0xff]
    %v63 = vld [vmem:[#allocation4 + $0x8] sm:$0xff]
    %v64 = vld [vmem:[#allocation4 + $0x10] sm:$0xff]
    %v65 = vld [vmem:[#allocation4 + $0x18] sm:$0xff]
    %v66 = vld [vmem:[%s2] sm:$0x1]
    %v68 = vlaneseq
    %v69 = vshrl.u32 %v68, 7
    %v70 = vsub.s32 0, %v69
    %v71 = vrot.slane %v66, %v70
    %vm73 = vcmask 261120
    %v75 = vsel %vm73, %v61, 0
    %77 = vmatprep.subr.mxu0 0.0
    %78 = vmatpush1.msra.mxu0 0.0
    %79 = vmatprep.subr.mxu0 0.0
    %80 = vmatpush1.msra.mxu0 0.0
    %81 = vmatprep.subr.mxu0 0.0
    %82 = vmatpush1.msra.mxu0 0.0
    %83 = vmatprep.subr.mxu0 0.0
    %84 = vmatpush1.msra.mxu0 0.0
    %85 = vmatprep.subr.mxu0 0.0
    %86 = vmatpush1.msra.mxu0 0.0
    %87 = vmatprep.subr.mxu0 0.0
    %88 = vmatpush1.msra.mxu0 0.0
    %89 = vmatprep.subr.mxu0 0.0
    %90 = vmatpush1.msra.mxu0 0.0
    %91 = vmatprep.subr.mxu0 0.0
    %92 = vmatpush1.msra.mxu0 0.0
    %93 = vmatprep.subr.mxu0 0.0
    %94 = vmatpush1.msra.mxu0 0.0
    %95 = vmatprep.subr.mxu0 0.0
    %96 = vmatpush1.msra.mxu0 0.0
    %97 = vmatprep.subr.mxu0 0.0
    %98 = vmatpush1.msra.mxu0 0.0
    %99 = vmatprep.subr.mxu0 0.0
    %100 = vmatpush1.msra.mxu0 0.0
    %101 = vmatprep.subr.mxu0 0.0
    %102 = vmatpush1.msra.mxu0 %v65
    %103 = vmatprep.subr.mxu0 0.0
    %104 = vmatpush1.msra.mxu0 %v64
    %105 = vmatprep.subr.mxu0 0.0
    %106 = vmatpush1.msra.mxu0 %v63
    %107 = vmatprep.subr.mxu0 0.0
    %108 = vmatpush1.msra.mxu0 %v62
    %109 = vmatprep.subr.mxu0 0.0
    %110 = vmatpush2.msra.mxu0 0.0
    %111 = vmatprep.subr.mxu0 0.0
    %112 = vmatpush2.msra.mxu0 0.0
    %113 = vmatprep.subr.mxu0 0.0
    %114 = vmatpush2.msra.mxu0 0.0
    %115 = vmatprep.subr.mxu0 0.0
    %116 = vmatpush2.msra.mxu0 0.0
    %117 = vmatprep.subr.mxu0 0.0
    %118 = vmatpush2.msra.mxu0 0.0
    %119 = vmatprep.subr.mxu0 0.0
    %120 = vmatpush2.msra.mxu0 0.0
    %121 = vmatprep.subr.mxu0 0.0
    %122 = vmatpush2.msra.mxu0 0.0
    %123 = vmatprep.subr.mxu0 0.0
    %124 = vmatpush2.msra.mxu0 0.0
    %125 = vmatprep.subr.mxu0 0.0
    %126 = vmatpush2.msra.mxu0 0.0
    %127 = vmatprep.subr.mxu0 0.0
    %128 = vmatpush2.msra.mxu0 0.0
    %129 = vmatprep.subr.mxu0 0.0
    %130 = vmatpush2.msra.mxu0 0.0
    %131 = vmatprep.subr.mxu0 0.0
    %132 = vmatpush2.msra.mxu0 0.0
    %133 = vmatprep.subr.mxu0 0.0
    %134 = vmatpush2.msra.mxu0 0.0
    %135 = vmatprep.subr.mxu0 0.0
    %136 = vmatpush2.msra.mxu0 0.0
    %137 = vmatprep.subr.mxu0 0.0
    %138 = vmatpush2.msra.mxu0 0.0
    %139 = vmatprep.subr.mxu0 0.0
    %140 = vmatpush2.msra.mxu0 0.0
    %141 = vmatprep.mubr.f32.mxu0 0.0
    %142 = vmatmul.mubr.f32.gmra.mxu0 %v75
    %v143 = vpop.f32.mrf.mxu0
    %v144 = vadd.f32 %v71, %v143
    %v145 = vpop.f32.mrf.mxu0
    %146 = vdwg.mxu0
    %v147 = vmax.f32 %v144, 0.0
    %v148 = vld [vmem:[#allocation6] sm:$0xff]
    %v149 = vld [vmem:[#allocation6 + $0x8] sm:$0xff]
    %v150 = vld [vmem:[#allocation6 + $0x10] sm:$0xff]
    %v151 = vld [vmem:[#allocation6 + $0x18] sm:$0xff]
    %v152 = vld [vmem:[#allocation6 + $0x20] sm:$0xff]
    %v153 = vld [vmem:[#allocation6 + $0x28] sm:$0xff]
    %v154 = vld [vmem:[#allocation6 + $0x30] sm:$0xff]
    %v155 = vld [vmem:[#allocation6 + $0x38] sm:$0xff]
    %v156 = vld [vmem:[#allocation6 + $0x40] sm:$0xff]
    %v157 = vld [vmem:[#allocation6 + $0x48] sm:$0xff]
    %v158 = vld [vmem:[#allocation6 + $0x50] sm:$0xff]
    %v159 = vld [vmem:[#allocation6 + $0x58] sm:$0xff]
    %v160 = vld [vmem:[#allocation6 + $0x60] sm:$0xff]
    %v161 = vld [vmem:[#allocation6 + $0x68] sm:$0xff]
    %v162 = vld [vmem:[#allocation6 + $0x70] sm:$0xff]
    %v163 = vld [vmem:[#allocation6 + $0x78] sm:$0xff]
    %v164 = vld [vmem:[%s4] sm:$0x1]
    %v166 = vlaneseq
    %v167 = vshrl.u32 %v166, 7
    %v168 = vsub.s32 0, %v167
    %v169 = vrot.slane %v164, %v168
    %171 = vmatprep.subr.mxu0 0.0
    %172 = vmatpush1.msra.mxu0 %v163
    %173 = vmatprep.subr.mxu0 0.0
    %174 = vmatpush1.msra.mxu0 %v162
    %175 = vmatprep.subr.mxu0 0.0
    %176 = vmatpush1.msra.mxu0 %v161
    %177 = vmatprep.subr.mxu0 0.0
    %178 = vmatpush1.msra.mxu0 %v160
    %179 = vmatprep.subr.mxu0 0.0
    %180 = vmatpush1.msra.mxu0 %v159
    %181 = vmatprep.subr.mxu0 0.0
    %182 = vmatpush1.msra.mxu0 %v158
    %183 = vmatprep.subr.mxu0 0.0
    %184 = vmatpush1.msra.mxu0 %v157
    %185 = vmatprep.subr.mxu0 0.0
    %186 = vmatpush1.msra.mxu0 %v156
    %187 = vmatprep.subr.mxu0 0.0
    %188 = vmatpush1.msra.mxu0 %v155
    %189 = vmatprep.subr.mxu0 0.0
    %190 = vmatpush1.msra.mxu0 %v154
    %191 = vmatprep.subr.mxu0 0.0
    %192 = vmatpush1.msra.mxu0 %v153
    %193 = vmatprep.subr.mxu0 0.0
    %194 = vmatpush1.msra.mxu0 %v152
    %195 = vmatprep.subr.mxu0 0.0
    %196 = vmatpush1.msra.mxu0 %v151
    %197 = vmatprep.subr.mxu0 0.0
    %198 = vmatpush1.msra.mxu0 %v150
    %199 = vmatprep.subr.mxu0 0.0
    %200 = vmatpush1.msra.mxu0 %v149
    %201 = vmatprep.subr.mxu0 0.0
    %202 = vmatpush1.msra.mxu0 %v148
    %203 = vmatprep.subr.mxu0 0.0
    %204 = vmatpush2.msra.mxu0 0.0
    %205 = vmatprep.subr.mxu0 0.0
    %206 = vmatpush2.msra.mxu0 0.0
    %207 = vmatprep.subr.mxu0 0.0
    %208 = vmatpush2.msra.mxu0 0.0
    %209 = vmatprep.subr.mxu0 0.0
    %210 = vmatpush2.msra.mxu0 0.0
    %211 = vmatprep.subr.mxu0 0.0
    %212 = vmatpush2.msra.mxu0 0.0
    %213 = vmatprep.subr.mxu0 0.0
    %214 = vmatpush2.msra.mxu0 0.0
    %215 = vmatprep.subr.mxu0 0.0
    %216 = vmatpush2.msra.mxu0 0.0
    %217 = vmatprep.subr.mxu0 0.0
    %218 = vmatpush2.msra.mxu0 0.0
    %219 = vmatprep.subr.mxu0 0.0
    %220 = vmatpush2.msra.mxu0 0.0
    %221 = vmatprep.subr.mxu0 0.0
    %222 = vmatpush2.msra.mxu0 0.0
    %223 = vmatprep.subr.mxu0 0.0
    %224 = vmatpush2.msra.mxu0 0.0
    %225 = vmatprep.subr.mxu0 0.0
    %226 = vmatpush2.msra.mxu0 0.0
    %227 = vmatprep.subr.mxu0 0.0
    %228 = vmatpush2.msra.mxu0 0.0
    %229 = vmatprep.subr.mxu0 0.0
    %230 = vmatpush2.msra.mxu0 0.0
    %231 = vmatprep.subr.mxu0 0.0
    %232 = vmatpush2.msra.mxu0 0.0
    %233 = vmatprep.subr.mxu0 0.0
    %234 = vmatpush2.msra.mxu0 0.0
    %235 = vmatprep.mubr.f32.mxu0 0.0
    %236 = vmatmul.mubr.f32.gmra.mxu0 %v147
    %v237 = vpop.f32.mrf.mxu0
    %v238 = vadd.f32 %v169, %v237
    %v239 = vpop.f32.mrf.mxu0
    %240 = vdwg.mxu0
    %v241 = vlaneseq
    %v242 = vand.u32 %v241, 127
    %vm243 = vcmp.lt.s32.totalorder %v242, 4
    %v244 = vsel %vm243, %v238, -inf
    %245 = vmax.xlane.f32.xlu0 %v244
    %v246 = vpop.xlane.xlu0 %245
    %v247 = vsub.f32 %v244, %v246
    %v248 = vmul.f32 %v247, 1.442695
    %v249 = vpow.pop %v248
    %v250 = vsel %vm243, %v249, 0.0
    %251 = vadd.xlane.f32.xlu0 %v250
    %v252 = vpop.xlane.xlu0 %251
    %v253 = vrcp.pop %v252
    %v254 = vmul.f32 %v250, %v253
    %vm255 = vcmask 31744
    %256 = vst.msk [vmem:[%s5] sm:$0xff] %vm255, %v254
    %258 = vrot.lane.b32.xlu0 %v238, 124
    %v259 = vpop.permute.xlu0 %258
    %vm261 = vcmask 7168
    %262 = vst.msk [vmem:[%s6] sm:$0xff] %vm261, %v259
    // Predicated region
    $region34: #{tpu_custom_call.1} parent=1 // pred_check
      _
    $region35: #{tpu_custom_call.1} parent=1 // pred_check_branch
      %264 = sbr.rel (0) target = $region37
    $region36: #{tpu_custom_call.1} parent=1 // pred_region
      _
    $region37: #{tpu_custom_call.1} parent=1 // pred_fallthru
      _
    // Predicated region
    $region38: #{tpu_custom_call.1} parent=1 // pred_check
      _
    $region39: #{tpu_custom_call.1} parent=1 // pred_check_branch
      %266 = sbr.rel (0) target = $region41
    $region40: #{tpu_custom_call.1} parent=1 // pred_region
      _
    $region41: #{tpu_custom_call.1} parent=1 // pred_fallthru
      _
    // Predicated region
    $region42: #{tpu_custom_call.1} parent=1 // pred_check
      _
    $region43: #{tpu_custom_call.1} parent=1 // pred_check_branch
      %268 = sbr.rel (0) target = $region45
    $region44: #{tpu_custom_call.1} parent=1 // pred_region
      _
    $region45: #{tpu_custom_call.1} parent=1 // pred_fallthru
      _
    // Predicated region
    $region46: #{tpu_custom_call.1} parent=1 // pred_check
      _
    $region47: #{tpu_custom_call.1} parent=1 // pred_check_branch
      %270 = sbr.rel (0) target = $region49
    $region48: #{tpu_custom_call.1} parent=1 // pred_region
      _
    $region49: #{tpu_custom_call.1} parent=1 // pred_fallthru
      _
    %271 = vsyncpa [#allocation3], 1
    %272 = vsyncpa [#allocation5], 1

</llo_original>
